<compile_context>
chip_gen: v7x
topology: tpu7x:2x2x1
jax: 0.10.0
libtpu: 0.0.40
codegen_flags: <defaults>
</compile_context>

<pallas_src>
import functools

import jax
import jax.numpy as jnp
from jax import lax
from jax.experimental import pallas as pl
from jax.experimental.pallas import tpu as pltpu


def linear_sigmoid_kernel(x_ref, w_ref, b_ref, o_ref):
    """One batch tile of y = sigmoid(x @ w^T + b).

    x_ref: (TB, F) VMEM  — activation tile (pipelined over the grid)
    w_ref: (1, F)  VMEM  — weight row, resident across grid steps
    b_ref: (1,)    SMEM  — scalar bias
    o_ref: (1, TB) VMEM  — lane-dense output row
    """
    x = x_ref[...]
    w = w_ref[...]
    bias = b_ref[0]

    # (1, F) · (TB, F) contracting the feature axes -> (1, TB).
    # NT matmul (same pattern as q @ k.T): no transpose op emitted, output is
    # lane-dense so the store is a full-width vst instead of a masked column store.
    z = lax.dot_general(
        w,
        x,
        dimension_numbers=(((1,), (1,)), ((), ())),
        preferred_element_type=jnp.float32,
    )
    z = z + bias

    # sigmoid(z) == 0.5 * (1 + tanh(z / 2)): one EUP op, no divide.
    y = 0.5 * jnp.tanh(0.5 * z) + 0.5
    o_ref[...] = y.astype(o_ref.dtype)


def _pick_batch_tile(F, itemsize, vmem_budget_bytes=8 * 1024 * 1024):
    """Largest multiple-of-128 row tile whose (tb, F) slab fits the VMEM budget.

    The pipeline double-buffers the x tile, so ~2x this is in flight; 8 MiB per
    buffer keeps us comfortably inside the scoped-VMEM default on v5e/v6e/v7x.
    """
    rows = vmem_budget_bytes // max(1, F * itemsize)
    rows = (rows // 128) * 128
    return max(128, min(4096, rows))


@functools.partial(jax.jit, static_argnames=("block_b",))
def model_forward(x, w, b, *, block_b=None):
    """Pallas forward for `sigmoid(nn.Linear(F, 1)(x))`.

    x: (B, F) f32, w: (1, F) f32, b: (1,) f32 -> (B, 1) f32.

    NOTE: for tiny B*F (e.g. the shipped B=8, F=32 demo) this is purely
    launch-overhead-bound; in a real model this op should be fused into the
    surrounding XLA graph rather than shipped as a standalone pallas_call.
    """
    B, F = x.shape
    tb_cap = block_b if block_b is not None else _pick_batch_tile(F, x.dtype.itemsize)

    # Batch tiling: single full-array tile for small B (block == full dims, so the
    # (8,128) rule is trivially satisfied); otherwise fixed `tb_cap`-row tiles
    # (multiple of 128 -> sublane/lane aligned) with zero padding of the tail.
    if B <= tb_cap:
        tb = B
        b_pad = B
    else:
        tb = tb_cap
        b_pad = pl.cdiv(B, tb) * tb

    x_p = x if b_pad == B else jnp.pad(x, ((0, b_pad - B), (0, 0)))
    num_tiles = b_pad // tb

    out_row = pl.pallas_call(
        linear_sigmoid_kernel,
        out_shape=jax.ShapeDtypeStruct((1, b_pad), x.dtype),
        grid=(num_tiles,),
        in_specs=[
            pl.BlockSpec((tb, F), lambda i: (i, 0)),             # x tile (pipelined)
            pl.BlockSpec((1, F), lambda i: (0, 0)),              # w grid-invariant
            pl.BlockSpec(memory_space=pltpu.MemorySpace.SMEM),   # bias scalar in SMEM
        ],
        out_specs=pl.BlockSpec((1, tb), lambda i: (0, i)),       # lane-dense row
        compiler_params=pltpu.CompilerParams(
            dimension_semantics=("parallel",),                   # megacore-shardable
        ),
    )(x_p, w, b)

    # Free layout plumbing back to the module's (B, 1) output.
    return out_row[0, :B].reshape(B, 1)


if __name__ == "__main__":
    # Small shapes consistent with the module: batch=8, n_input_features=32.
    B, F = 8, 32
    key = jax.random.PRNGKey(0)
    kx, kw, kb = jax.random.split(key, 3)

    x = jax.random.normal(kx, (B, F), dtype=jnp.float32)

    # Deterministic params mimicking nn.Linear default init: U(-1/sqrt(F), 1/sqrt(F)).
    bound = 1.0 / jnp.sqrt(jnp.float32(F))
    w = jax.random.uniform(kw, (1, F), dtype=jnp.float32, minval=-bound, maxval=bound)
    b = jax.random.uniform(kb, (1,), dtype=jnp.float32, minval=-bound, maxval=bound)

    y = model_forward(x, w, b)
    jax.block_until_ready(y)

    y_ref = jax.nn.sigmoid(x @ w.T + b)
    assert y.shape == (B, 1)
    assert jnp.allclose(y, y_ref, atol=2e-6, rtol=1e-5)

    # Also exercise the gridded + padded path (B > tile, B % tile != 0).
    B2 = 300
    x2 = jax.random.normal(kx, (B2, F), dtype=jnp.float32)
    y2 = model_forward(x2, w, b, block_b=128)
    jax.block_until_ready(y2)
    y2_ref = jax.nn.sigmoid(x2 @ w.T + b)
    assert y2.shape == (B2, 1)
    assert jnp.allclose(y2, y2_ref, atol=2e-6, rtol=1e-5)

    print("KERNEL_OK")
</pallas_src>

<mosaic_0001>
module attributes {stable_mosaic.version = 11 : i64} {
  func.func @linear_sigmoid_kernel(%arg0: i32, %arg1: memref<8x32xf32, #tpu.memory_space<vmem>>, %arg2: memref<1x32xf32, #tpu.memory_space<vmem>>, %arg3: memref<1xf32, #tpu.memory_space<smem>>, %arg4: memref<1x8xf32, #tpu.memory_space<vmem>>) attributes {dimension_semantics = [#tpu.dimension_semantics<parallel>], iteration_bounds = array<i64: 1>, scalar_prefetch = 0 : i64, scratch_operands = 0 : i64, tpu.core_type = #tpu.core_type<tc>, window_params = [{transform_indices = @transform_0, window_bounds = array<i64: 8, 32>}, {pipeline_mode = #tpu.pipeline_mode<synchronous>, transform_indices = @transform_1, window_bounds = array<i64: 1, 32>}, {transform_indices = @transform_2, window_bounds = array<i64: 1>}, {transform_indices = @transform_3, window_bounds = array<i64: 1, 8>}]} {
    %c0 = arith.constant 0 : index
    %c0_0 = arith.constant 0 : index
    %0 = vector.load %arg1[%c0, %c0_0] : memref<8x32xf32, #tpu.memory_space<vmem>>, vector<8x32xf32>
    %c0_1 = arith.constant 0 : index
    %c0_2 = arith.constant 0 : index
    %1 = vector.load %arg2[%c0_1, %c0_2] : memref<1x32xf32, #tpu.memory_space<vmem>>, vector<1x32xf32>
    %c0_3 = arith.constant 0 : index
    %2 = memref.load %arg3[%c0_3] : memref<1xf32, #tpu.memory_space<smem>>
    %cst = arith.constant dense<0.000000e+00> : vector<1x8xf32>
    %3 = tpu.matmul %1, %0, %cst {dimension_numbers = #tpu.dot_dimension_numbers<[1], [1], [0], [0], [0, 0, 1, 0], [], []>} : vector<1x32xf32>, vector<8x32xf32>, vector<1x8xf32> -> vector<1x8xf32>
    %4 = vector.broadcast %2 : f32 to vector<1x8xf32>
    %5 = arith.addf %3, %4 : vector<1x8xf32>
    %cst_4 = arith.constant 5.000000e-01 : f32
    %6 = vector.broadcast %cst_4 : f32 to vector<1x8xf32>
    %7 = arith.mulf %6, %5 : vector<1x8xf32>
    %8 = math.tanh %7 : vector<1x8xf32>
    %cst_5 = arith.constant 5.000000e-01 : f32
    %9 = vector.broadcast %cst_5 : f32 to vector<1x8xf32>
    %10 = arith.mulf %9, %8 : vector<1x8xf32>
    %cst_6 = arith.constant 5.000000e-01 : f32
    %11 = vector.broadcast %cst_6 : f32 to vector<1x8xf32>
    %12 = arith.addf %10, %11 : vector<1x8xf32>
    %c0_7 = arith.constant 0 : index
    %c0_8 = arith.constant 0 : index
    %13 = vector.load %arg4[%c0_7, %c0_8] : memref<1x8xf32, #tpu.memory_space<vmem>>, vector<1x8xf32>
    tpu.vector_store %arg4[%c0_7, %c0_8], %12 {strides = array<i32>} : memref<1x8xf32, #tpu.memory_space<vmem>>, vector<1x8xf32>,
    return
  }
  func.func @transform_0(%arg0: i32) -> (i32, i32) {
    %c0_i32 = arith.constant 0 : i32
    %c0_i32_0 = arith.constant 0 : i32
    return %arg0, %c0_i32 : i32, i32
  }
  func.func @transform_1(%arg0: i32) -> (i32, i32) {
    %c0_i32 = arith.constant 0 : i32
    %c0_i32_0 = arith.constant 0 : i32
    %c0_i32_1 = arith.constant 0 : i32
    return %c0_i32, %c0_i32_0 : i32, i32
  }
  func.func @transform_2(%arg0: i32) -> i32 {
    %c0_i32 = arith.constant 0 : i32
    %c0_i32_0 = arith.constant 0 : i32
    return %c0_i32 : i32
  }
  func.func @transform_3(%arg0: i32) -> (i32, i32) {
    %c0_i32 = arith.constant 0 : i32
    %c0_i32_0 = arith.constant 0 : i32
    return %c0_i32, %arg0 : i32, i32
  }
}

</mosaic_0001>

<llo_original>
// kernel: model_forward.1
$region0: #{model_forward.1}
  #allocation0 [shape = 'u32[]', space=smem, size = 0x4, offset = 0x4, fixed_abs, tag = 'smem constant byte address 0x4 - core index']
  #allocation1 [shape = 'u32[144,128]{1,0:T(1,128)}', space=vmem, size = 0x12000, scoped, tag = 'internal scratch']
  #allocation2 [shape = 'f32[1]{0:T(128)S(6)}', space=smem, size = 0x200, scoped, tag = 'scoped memory for model_forward.1']
  %s0 = inlined_call_operand.hbm [shape: f32[8,32], index: 0, kind: input, shape index: {}]
  %s1 = inlined_call_operand.vmem [shape: f32[1,32], index: 1, kind: input, shape index: {}]
  %s2 = inlined_call_operand.<no memory space> [shape: f32[1], index: 2, kind: input, shape index: {}]
  %s3 = inlined_call_operand.hbm [shape: f32[1,8], index: 3, kind: output, shape index: {}]
  %s4 = sld [smem:[#allocation0]]
  $region26: #{model_forward.1} parent=0
    _
  %s6 = ssub.s32 1, %s4
  %s7 = scalar_select 0, %s6, %s4
  %8 = sst [smem:[#allocation2]] %s2
  $region1: #{model_forward.1} parent=0
    #allocation3 [shape = 'u8[4096]{0}', space=vmem, size = 0x1000, scoped, tag = 'input window, operand 0, single buffered']
    #allocation4 [shape = 's32[1]{0}', space=sflag, size = 0x4, scoped, tag = 'scoped memory for model_forward.1']
    #allocation5 [shape = 's32[1]{0}', space=sflag, size = 0x4, scoped, tag = 'scoped memory for model_forward.1']
    #allocation6 [shape = 'u8[512]{0}', space=vmem, size = 0x400, scoped, tag = 'output window, operand 0, single buffered']
    %9 = vsyncpa [#allocation4], 0
    %10 = vsyncpa [#allocation5], 0
    // Predicated region
    $region2: #{model_forward.1} parent=1 // pred_check
      _
    $region3: #{model_forward.1} parent=1 // pred_check_branch
      %12 = sbr.rel (0) target = $region5
    $region4: #{model_forward.1} parent=1 // pred_region
      %s14 = ssub.s32 128, 128
      %15 = vsyncadd [#allocation4], %s14
      %s17 = sshll.u32 [#allocation3], 4
      %s18 = int_to_ptr.vmem [resolvable:$true] %s17
      %20 = dma.hbm_to_vmem [thread:$0]  %s0, 128, %s18, [#allocation4]
    $region5: #{model_forward.1} parent=1 // pred_fallthru
      _
    // Predicated region
    $region6: #{model_forward.1} parent=1 // pred_check
      _
    $region7: #{model_forward.1} parent=1 // pred_check_branch
      %22 = sbr.rel (0) target = $region9
    $region8: #{model_forward.1} parent=1 // pred_region
      _
    $region9: #{model_forward.1} parent=1 // pred_fallthru
      _
    // Predicated region
    $region10: #{model_forward.1} parent=1 // pred_check
      _
    $region11: #{model_forward.1} parent=1 // pred_check_branch
      %24 = sbr.rel (0) target = $region13
    $region12: #{model_forward.1} parent=1 // pred_region
      _
    $region13: #{model_forward.1} parent=1 // pred_fallthru
      _
    // Predicated region
    $region14: #{model_forward.1} parent=1 // pred_check
      _
    $region15: #{model_forward.1} parent=1 // pred_check_branch
      %26 = sbr.rel (0) target = $region17
    $region16: #{model_forward.1} parent=1 // pred_region
      %27 = dma.done [#allocation4], 128
    $region17: #{model_forward.1} parent=1 // pred_fallthru
      _
    %v28 = vld [vmem:[#allocation3] sm:$0xff]
    %v29 = vld [vmem:[%s1] sm:$0x1]
    %s30 = sld [smem:[#allocation2]]
    %v31 = vstv %s30
    %vm32 = vcmask 261120
    %v34 = vsel %vm32, %v29, 0
    %v37 = vsel %vm32, %v28, 0
    %39 = vmatprep.subr.mxu0 0.0
    %40 = vmatpush1.xpose.msra.mxu0 %v37
    %41 = vmatprep.subr.mxu0 0.0
    %42 = vmatpush1.xpose.msra.mxu0 0.0
    %43 = vmatprep.subr.mxu0 0.0
    %44 = vmatpush1.xpose.msra.mxu0 0.0
    %45 = vmatprep.subr.mxu0 0.0
    %46 = vmatpush1.xpose.msra.mxu0 0.0
    %47 = vmatprep.subr.mxu0 0.0
    %48 = vmatpush1.xpose.msra.mxu0 0.0
    %49 = vmatprep.subr.mxu0 0.0
    %50 = vmatpush1.xpose.msra.mxu0 0.0
    %51 = vmatprep.subr.mxu0 0.0
    %52 = vmatpush1.xpose.msra.mxu0 0.0
    %53 = vmatprep.subr.mxu0 0.0
    %54 = vmatpush1.xpose.msra.mxu0 0.0
    %55 = vmatprep.subr.mxu0 0.0
    %56 = vmatpush1.xpose.msra.mxu0 0.0
    %57 = vmatprep.subr.mxu0 0.0
    %58 = vmatpush1.xpose.msra.mxu0 0.0
    %59 = vmatprep.subr.mxu0 0.0
    %60 = vmatpush1.xpose.msra.mxu0 0.0
    %61 = vmatprep.subr.mxu0 0.0
    %62 = vmatpush1.xpose.msra.mxu0 0.0
    %63 = vmatprep.subr.mxu0 0.0
    %64 = vmatpush1.xpose.msra.mxu0 0.0
    %65 = vmatprep.subr.mxu0 0.0
    %66 = vmatpush1.xpose.msra.mxu0 0.0
    %67 = vmatprep.subr.mxu0 0.0
    %68 = vmatpush1.xpose.msra.mxu0 0.0
    %69 = vmatprep.subr.mxu0 0.0
    %70 = vmatpush1.xpose.msra.mxu0 0.0
    %71 = vmatprep.subr.mxu0 0.0
    %72 = vmatpush1.xpose.msra.mxu0 0.0
    %73 = vmatprep.subr.mxu0 0.0
    %74 = vmatpush1.xpose.msra.mxu0 0.0
    %75 = vmatprep.subr.mxu0 0.0
    %76 = vmatpush1.xpose.msra.mxu0 0.0
    %77 = vmatprep.subr.mxu0 0.0
    %78 = vmatpush1.xpose.msra.mxu0 0.0
    %79 = vmatprep.subr.mxu0 0.0
    %80 = vmatpush1.xpose.msra.mxu0 0.0
    %81 = vmatprep.subr.mxu0 0.0
    %82 = vmatpush1.xpose.msra.mxu0 0.0
    %83 = vmatprep.subr.mxu0 0.0
    %84 = vmatpush1.xpose.msra.mxu0 0.0
    %85 = vmatprep.subr.mxu0 0.0
    %86 = vmatpush1.xpose.msra.mxu0 0.0
    %87 = vmatprep.subr.mxu0 0.0
    %88 = vmatpush1.xpose.msra.mxu0 0.0
    %89 = vmatprep.subr.mxu0 0.0
    %90 = vmatpush1.xpose.msra.mxu0 0.0
    %91 = vmatprep.subr.mxu0 0.0
    %92 = vmatpush1.xpose.msra.mxu0 0.0
    %93 = vmatprep.subr.mxu0 0.0
    %94 = vmatpush1.xpose.msra.mxu0 0.0
    %95 = vmatprep.subr.mxu0 0.0
    %96 = vmatpush1.xpose.msra.mxu0 0.0
    %97 = vmatprep.subr.mxu0 0.0
    %98 = vmatpush1.xpose.msra.mxu0 0.0
    %99 = vmatprep.subr.mxu0 0.0
    %100 = vmatpush1.xpose.msra.mxu0 0.0
    %101 = vmatprep.subr.mxu0 0.0
    %102 = vmatpush1.xpose.msra.mxu0 0.0
    %103 = vmatprep.mubr.f32.mxu0 0.0
    %104 = vmatmul.mubr.f32.gmra.mrb[0].mxu0 %v34
    %v105 = vpop.f32.mrb[0].mxu0
    %v106 = vadd.f32 %v31, %v105
    %v107 = vpop.f32.mrb[0].mxu0
    %108 = vdwg.mxu0
    %v109 = vmul.f32 %v106, 0.5
    %v110 = vtanh.pop %v109
    %v111 = vmul.f32 %v110, 0.5
    %v112 = vadd.f32 %v111, 0.5
    %vm113 = vcmask 57344
    %114 = vst.msk [vmem:[#allocation6] sm:$0x1] %vm113, %v112
    // Predicated region
    $region18: #{model_forward.1} parent=1 // pred_check
      _
    $region19: #{model_forward.1} parent=1 // pred_check_branch
      %116 = sbr.rel (0) target = $region21
    $region20: #{model_forward.1} parent=1 // pred_region
      %s118 = ssub.s32 16, 16
      %119 = vsyncadd [#allocation5], %s118
      %s121 = sshll.u32 [#allocation6], 4
      %s122 = int_to_ptr.vmem [resolvable:$true] %s121
      %124 = dma.vmem_to_hbm [thread:$0]  %s122, 16, %s3, [#allocation5]
    $region21: #{model_forward.1} parent=1 // pred_fallthru
      _
    // Predicated region
    $region22: #{model_forward.1} parent=1 // pred_check
      _
    $region23: #{model_forward.1} parent=1 // pred_check_branch
      %126 = sbr.rel (0) target = $region25
    $region24: #{model_forward.1} parent=1 // pred_region
      %127 = dma.done [#allocation5], 16
    $region25: #{model_forward.1} parent=1 // pred_fallthru
      _
    %128 = vsyncpa [#allocation4], 1
    %129 = vsyncpa [#allocation5], 1

</llo_original>
